<compile_context>
chip_gen: v7x
topology: tpu7x:2x2x1
jax: 0.10.0
libtpu: 0.0.40
codegen_flags: <defaults>
</compile_context>

<pallas_src>
import functools

import jax
import jax.numpy as jnp
from jax.experimental import pallas as pl
from jax.experimental.pallas import tpu as pltpu


def _round_up(x, m):
    return (x + m - 1) // m * m


# ----------------------------- Pallas kernels --------------------------------

def _mm_fullk_kernel(*refs, apply_relu, has_residual):
    # a (tm, K) bf16, w (K, Np) bf16 [resident, fetched once],
    # scale (1, Np) f32, bias (1, Np) f32, [res (tm, Np) bf16],
    # out (tm, Np) bf16.
    if has_residual:
        a_ref, w_ref, scale_ref, bias_ref, res_ref, o_ref = refs
    else:
        a_ref, w_ref, scale_ref, bias_ref, o_ref = refs
        res_ref = None

    acc = jnp.dot(a_ref[...], w_ref[...], preferred_element_type=jnp.float32)
    out = acc * scale_ref[...] + bias_ref[...]
    if has_residual:
        out = out + res_ref[...].astype(jnp.float32)
    if apply_relu:
        out = jnp.maximum(out, 0.0)
    o_ref[...] = out.astype(o_ref.dtype)


def _mm_ktiled_kernel(*refs, apply_relu, has_residual, tk):
    # Fallback when the full-K working set would not fit VMEM.
    # a (tm, tk) bf16, w (Kp, Np) bf16 [whole weight resident],
    # scale/bias (1, Np) f32, [res (tm, Np) bf16], out (tm, Np) bf16,
    # acc (tm, Np) f32 scratch.
    if has_residual:
        a_ref, w_ref, scale_ref, bias_ref, res_ref, o_ref, acc_ref = refs
    else:
        a_ref, w_ref, scale_ref, bias_ref, o_ref, acc_ref = refs
        res_ref = None

    k = pl.program_id(1)

    @pl.when(k == 0)
    def _():
        acc_ref[...] = jnp.zeros_like(acc_ref)

    start = pl.multiple_of(k * tk, tk)
    acc_ref[...] += jnp.dot(a_ref[...], w_ref[pl.ds(start, tk), :],
                            preferred_element_type=jnp.float32)

    @pl.when(k == pl.num_programs(1) - 1)
    def _():
        out = acc_ref[...] * scale_ref[...] + bias_ref[...]
        if has_residual:
            out = out + res_ref[...].astype(jnp.float32)
        if apply_relu:
            out = jnp.maximum(out, 0.0)
        o_ref[...] = out.astype(o_ref.dtype)


# ------------------------------ matmul wrapper --------------------------------

_VMEM_BUDGET = 36 * 1024 * 1024   # working-set target (fits v7x 64 MiB VMEM)
_VMEM_LIMIT = 48 * 1024 * 1024    # scoped VMEM limit passed to the compiler


def _footprint(tm, tk, Kp, Np, has_res, k_tiled):
    a = 2 * tm * tk * 2                    # double-buffered bf16 A tile
    w = 2 * Kp * Np * 2                    # resident bf16 weight (2 bufs worst case)
    vec = 2 * 2 * Np * 4                   # scale + bias
    out = 2 * tm * Np * 2                  # bf16 output tile
    res = 2 * tm * Np * 2 if has_res else 0
    acc = tm * Np * 4 if k_tiled else 0
    return a + w + vec + out + res + acc


def fused_matmul(a, w, scale, bias, residual=None, *, apply_relu):
    """relu?( ((M,K)@(K,N)) * scale + bias (+ residual) ), bf16 MXU / f32 math.

    Output is bf16.  N is padded to a multiple of 128 (lane-dense stores);
    M only when the row tile does not divide it; K never on the full-K path.
    """
    M, K = a.shape
    Kw, N = w.shape
    assert K == Kw
    has_res = residual is not None

    Np = _round_up(N, 128)

    # Row tile: as tall as possible (taller for narrow outputs), no forced
    # multi-step split (single-TC v5e/v6e gains nothing; on v7x the M axis is
    # "parallel" and naturally splits when M is large).
    tm_cap = 1024 if Np <= 128 else 512
    tm = min(tm_cap, _round_up(M, 8))

    # Primary path: single full-K block -> weight fetched from HBM once, no
    # accumulator RMW, no K grid axis.  Fallback: K-tiled with the whole
    # weight still VMEM-resident (constant block index) and in-kernel slicing.
    k_tiled = False
    tk, Kp = K, K
    while tm > 256 and _footprint(tm, tk, Kp, Np, has_res, False) > _VMEM_BUDGET:
        tm = max(256, _round_up(tm // 2, 8))
    if _footprint(tm, tk, Kp, Np, has_res, False) > _VMEM_BUDGET:
        k_tiled = True
        tk = 512
        Kp = _round_up(K, tk)
        while (tm > 256 and
               _footprint(tm, tk, Kp, Np, has_res, True) > _VMEM_BUDGET):
            tm = max(256, _round_up(tm // 2, 8))

    Mp = pl.cdiv(M, tm) * tm

    # Host-side padding only where actually needed (pads are full-tensor
    # copies; the full-K path needs no K padding at all).
    a_p = a.astype(jnp.bfloat16)
    if Mp != M or Kp != K:
        a_p = jnp.pad(a_p, ((0, Mp - M), (0, Kp - K)))
    w_p = w.astype(jnp.bfloat16)
    if Kp != K or Np != N:
        w_p = jnp.pad(w_p, ((0, Kp - K), (0, Np - N)))
    s_p = scale.astype(jnp.float32).reshape(1, N)
    b_p = bias.astype(jnp.float32).reshape(1, N)
    if Np != N:
        s_p = jnp.pad(s_p, ((0, 0), (0, Np - N)))
        b_p = jnp.pad(b_p, ((0, 0), (0, Np - N)))

    inputs = [a_p, w_p, s_p, b_p]
    if has_res:
        r_p = residual.astype(jnp.bfloat16)
        if Mp != M or Np != N:
            r_p = jnp.pad(r_p, ((0, Mp - M), (0, Np - N)))
        inputs.append(r_p)

    if not k_tiled:
        grid = (Mp // tm,)
        in_specs = [
            pl.BlockSpec((tm, K), lambda i: (i, 0)),
            pl.BlockSpec((K, Np), lambda i: (0, 0)),     # resident, fetched once
            pl.BlockSpec((1, Np), lambda i: (0, 0)),
            pl.BlockSpec((1, Np), lambda i: (0, 0)),
        ]
        if has_res:
            in_specs.append(pl.BlockSpec((tm, Np), lambda i: (i, 0)))
        out_specs = pl.BlockSpec((tm, Np), lambda i: (i, 0))
        kernel = functools.partial(_mm_fullk_kernel, apply_relu=apply_relu,
                                   has_residual=has_res)
        scratch = []
        dims = ("parallel",)
    else:
        grid = (Mp // tm, Kp // tk)
        in_specs = [
            pl.BlockSpec((tm, tk), lambda i, k: (i, k)),
            pl.BlockSpec((Kp, Np), lambda i, k: (0, 0)),  # resident weight
            pl.BlockSpec((1, Np), lambda i, k: (0, 0)),
            pl.BlockSpec((1, Np), lambda i, k: (0, 0)),
        ]
        if has_res:
            in_specs.append(pl.BlockSpec((tm, Np), lambda i, k: (i, 0)))
        out_specs = pl.BlockSpec((tm, Np), lambda i, k: (i, 0))
        kernel = functools.partial(_mm_ktiled_kernel, apply_relu=apply_relu,
                                   has_residual=has_res, tk=tk)
        scratch = [pltpu.VMEM((tm, Np), jnp.float32)]
        dims = ("parallel", "arbitrary")

    bytes_accessed = (Mp * Kp * 2 + Kp * Np * 2 + 2 * Np * 4 + Mp * Np * 2
                      + (Mp * Np * 2 if has_res else 0))

    out = pl.pallas_call(
        kernel,
        out_shape=jax.ShapeDtypeStruct((Mp, Np), jnp.bfloat16),
        grid_spec=pltpu.PrefetchScalarGridSpec(
            num_scalar_prefetch=0,
            grid=grid,
            in_specs=in_specs,
            out_specs=out_specs,
            scratch_shapes=scratch,
        ),
        compiler_params=pltpu.CompilerParams(
            dimension_semantics=dims,
            vmem_limit_bytes=_VMEM_LIMIT),
        cost_estimate=pl.CostEstimate(flops=2 * Mp * Kp * Np,
                                      transcendentals=0,
                                      bytes_accessed=bytes_accessed),
    )(*inputs)
    if Mp != M or Np != N:
        out = out[:M, :N]
    return out


# ------------------------------ JAX glue -------------------------------------

def im2col_3x3(x_nhwc, stride):
    """3x3, pad=1 patches in bf16.  Returns ((N*Ho*Wo, 9*C), (Ho, Wo))."""
    N, H, W, C = x_nhwc.shape
    Ho = (H + 2 - 3) // stride + 1
    Wo = (W + 2 - 3) // stride + 1
    xb = x_nhwc.astype(jnp.bfloat16)          # patches materialized in bf16
    xp = jnp.pad(xb, ((0, 0), (1, 1), (1, 1), (0, 0)))
    taps = []
    for dh in range(3):
        for dw in range(3):
            taps.append(xp[:,
                           dh:dh + (Ho - 1) * stride + 1:stride,
                           dw:dw + (Wo - 1) * stride + 1:stride, :])
    p = jnp.stack(taps, axis=3)               # (N, Ho, Wo, 9, C)
    return p.reshape(N * Ho * Wo, 9 * C), (Ho, Wo)


def fold_bn(bn, eps=1e-5):
    """Fold eval-mode BatchNorm into per-channel (scale, bias)."""
    scale = bn["gamma"] / jnp.sqrt(bn["running_var"] + eps)
    bias = bn["beta"] - bn["running_mean"] * scale
    return scale.astype(jnp.float32), bias.astype(jnp.float32)


def conv_w_to_matmul(w_oihw):
    """(Cout, Cin, kh, kw) -> (kh*kw*Cin, Cout), matching im2col tap order."""
    Cout, Cin, kh, kw = w_oihw.shape
    return jnp.transpose(w_oihw, (2, 3, 1, 0)).reshape(kh * kw * Cin, Cout)


def basic_block_forward(x_nchw, params, stride):
    x = jnp.transpose(x_nchw, (0, 2, 3, 1)).astype(jnp.float32)  # -> NHWC
    N, H, W, Cin = x.shape
    planes = params["conv1_w"].shape[0]

    # conv1 -> bn1 -> relu  (fused; BN scale applied as f32 in the epilogue)
    patches1, (Ho, Wo) = im2col_3x3(x, stride)
    s1, b1 = fold_bn(params["bn1"])
    w1 = conv_w_to_matmul(params["conv1_w"])
    out1 = fused_matmul(patches1, w1, s1, b1, apply_relu=True)    # bf16
    out1 = out1.reshape(N, Ho, Wo, planes)

    # shortcut branch
    if stride != 1 or Cin != planes:
        xs = x[:, ::stride, ::stride, :].reshape(-1, Cin)         # 1x1, stride
        ss, bs = fold_bn(params["sc_bn"])
        ws = conv_w_to_matmul(params["sc_w"])
        res = fused_matmul(xs, ws, ss, bs, apply_relu=False)      # bf16
    else:
        res = x.reshape(-1, Cin)

    # conv2 -> bn2 -> (+shortcut) -> relu  (fused)
    patches2, _ = im2col_3x3(out1, 1)
    s2, b2 = fold_bn(params["bn2"])
    w2 = conv_w_to_matmul(params["conv2_w"])
    out2 = fused_matmul(patches2, w2, s2, b2, residual=res, apply_relu=True)
    out2 = out2.reshape(N, Ho, Wo, planes)
    return jnp.transpose(out2.astype(jnp.float32), (0, 3, 1, 2))  # -> NCHW


# --------------------------- pure-JAX reference ------------------------------

def _conv_ref(x_nhwc, w_oihw, stride, pad):
    return jax.lax.conv_general_dilated(
        x_nhwc, jnp.transpose(w_oihw, (2, 3, 1, 0)),
        window_strides=(stride, stride), padding=((pad, pad), (pad, pad)),
        dimension_numbers=("NHWC", "HWIO", "NHWC"))


def basic_block_ref(x_nchw, params, stride):
    x = jnp.transpose(x_nchw, (0, 2, 3, 1)).astype(jnp.float32)
    s1, b1 = fold_bn(params["bn1"])
    s2, b2 = fold_bn(params["bn2"])
    out = jax.nn.relu(_conv_ref(x, params["conv1_w"], stride, 1) * s1 + b1)
    out = _conv_ref(out, params["conv2_w"], 1, 1) * s2 + b2
    if stride != 1 or x.shape[-1] != params["conv1_w"].shape[0]:
        ss, bs = fold_bn(params["sc_bn"])
        sc = _conv_ref(x, params["sc_w"], stride, 0) * ss + bs
    else:
        sc = x
    out = jax.nn.relu(out + sc)
    return jnp.transpose(out, (0, 3, 1, 2))


# --------------------------------- main ---------------------------------------

def init_params(key, in_planes, planes):
    ks = jax.random.split(key, 15)

    def bn(kg, kb, km, kv, c):
        return dict(
            gamma=1.0 + 0.1 * jax.random.normal(kg, (c,), jnp.float32),
            beta=0.1 * jax.random.normal(kb, (c,), jnp.float32),
            running_mean=0.1 * jax.random.normal(km, (c,), jnp.float32),
            running_var=1.0 + 0.1 * jax.random.uniform(kv, (c,), jnp.float32),
        )

    return dict(
        conv1_w=0.1 * jax.random.normal(ks[0], (planes, in_planes, 3, 3),
                                        jnp.float32),
        conv2_w=0.1 * jax.random.normal(ks[1], (planes, planes, 3, 3),
                                        jnp.float32),
        sc_w=0.1 * jax.random.normal(ks[2], (planes, in_planes, 1, 1),
                                     jnp.float32),
        bn1=bn(ks[3], ks[4], ks[5], ks[6], planes),
        bn2=bn(ks[7], ks[8], ks[9], ks[10], planes),
        sc_bn=bn(ks[11], ks[12], ks[13], ks[14], planes),
    )


if __name__ == "__main__":
    key = jax.random.PRNGKey(0)
    k_x, k_p = jax.random.split(key)

    batch, in_planes, planes, spatial, stride = 2, 4, 8, 16, 2
    x = jax.random.normal(k_x, (batch, in_planes, spatial, spatial),
                          jnp.float32)
    params = init_params(k_p, in_planes, planes)

    out = basic_block_forward(x, params, stride)
    out = jax.block_until_ready(out)

    ref = jax.block_until_ready(basic_block_ref(x, params, stride))
    assert out.shape == ref.shape == (batch, planes, spatial // stride,
                                      spatial // stride)
    # Tolerance loosened vs f32 reference: patches/weights feed the MXU in
    # bf16 (f32 accumulation) and the conv outputs are stored in bf16.
    assert jnp.allclose(out, ref, atol=5e-2, rtol=5e-2), "mismatch vs reference"

    print("KERNEL_OK")
</pallas_src>

<mosaic_0001>
module attributes {stable_mosaic.version = 11 : i64} {
  func.func @_mm_fullk_kernel(%arg0: i32, %arg1: memref<128x36xbf16, #tpu.memory_space<vmem>>, %arg2: memref<36x128xbf16, #tpu.memory_space<vmem>>, %arg3: memref<1x128xf32, #tpu.memory_space<vmem>>, %arg4: memref<1x128xf32, #tpu.memory_space<vmem>>, %arg5: memref<128x128xbf16, #tpu.memory_space<vmem>>) attributes {dimension_semantics = [#tpu.dimension_semantics<parallel>], iteration_bounds = array<i64: 1>, scalar_prefetch = 0 : i64, scratch_operands = 0 : i64, tpu.core_type = #tpu.core_type<tc>, window_params = [{transform_indices = @transform_0, window_bounds = array<i64: 128, 36>}, {pipeline_mode = #tpu.pipeline_mode<synchronous>, transform_indices = @transform_1, window_bounds = array<i64: 36, 128>}, {pipeline_mode = #tpu.pipeline_mode<synchronous>, transform_indices = @transform_2, window_bounds = array<i64: 1, 128>}, {pipeline_mode = #tpu.pipeline_mode<synchronous>, transform_indices = @transform_3, window_bounds = array<i64: 1, 128>}, {transform_indices = @transform_4, window_bounds = array<i64: 128, 128>}]} {
    %c0 = arith.constant 0 : index
    %c0_0 = arith.constant 0 : index
    %0 = vector.load %arg1[%c0, %c0_0] : memref<128x36xbf16, #tpu.memory_space<vmem>>, vector<128x36xbf16>
    %c0_1 = arith.constant 0 : index
    %c0_2 = arith.constant 0 : index
    %1 = vector.load %arg2[%c0_1, %c0_2] : memref<36x128xbf16, #tpu.memory_space<vmem>>, vector<36x128xbf16>
    %cst = arith.constant dense<0.000000e+00> : vector<128x128xf32>
    %2 = tpu.matmul %0, %1, %cst {dimension_numbers = #tpu.dot_dimension_numbers<[1], [0], [0], [1], [0, 0, 1, 1], [], []>} : vector<128x36xbf16>, vector<36x128xbf16>, vector<128x128xf32> -> vector<128x128xf32>
    %c0_3 = arith.constant 0 : index
    %c0_4 = arith.constant 0 : index
    %3 = vector.load %arg3[%c0_3, %c0_4] : memref<1x128xf32, #tpu.memory_space<vmem>>, vector<1x128xf32>
    %4 = vector.broadcast %3 : vector<1x128xf32> to vector<128x128xf32>
    %5 = arith.mulf %2, %4 : vector<128x128xf32>
    %c0_5 = arith.constant 0 : index
    %c0_6 = arith.constant 0 : index
    %6 = vector.load %arg4[%c0_5, %c0_6] : memref<1x128xf32, #tpu.memory_space<vmem>>, vector<1x128xf32>
    %7 = vector.broadcast %6 : vector<1x128xf32> to vector<128x128xf32>
    %8 = arith.addf %5, %7 : vector<128x128xf32>
    %cst_7 = arith.constant 0.000000e+00 : f32
    %9 = vector.broadcast %cst_7 : f32 to vector<128x128xf32>
    %10 = arith.maximumf %8, %9 : vector<128x128xf32>
    %11 = arith.truncf %10 : vector<128x128xf32> to vector<128x128xbf16>
    %c0_8 = arith.constant 0 : index
    %c0_9 = arith.constant 0 : index
    %12 = vector.load %arg5[%c0_8, %c0_9] : memref<128x128xbf16, #tpu.memory_space<vmem>>, vector<128x128xbf16>
    tpu.vector_store %arg5[%c0_8, %c0_9], %11 {strides = array<i32>} : memref<128x128xbf16, #tpu.memory_space<vmem>>, vector<128x128xbf16>,
    return
  }
  func.func @transform_0(%arg0: i32) -> (i32, i32) {
    %c0_i32 = arith.constant 0 : i32
    %c0_i32_0 = arith.constant 0 : i32
    return %arg0, %c0_i32 : i32, i32
  }
  func.func @transform_1(%arg0: i32) -> (i32, i32) {
    %c0_i32 = arith.constant 0 : i32
    %c0_i32_0 = arith.constant 0 : i32
    %c0_i32_1 = arith.constant 0 : i32
    return %c0_i32, %c0_i32_0 : i32, i32
  }
  func.func @transform_2(%arg0: i32) -> (i32, i32) {
    %c0_i32 = arith.constant 0 : i32
    %c0_i32_0 = arith.constant 0 : i32
    %c0_i32_1 = arith.constant 0 : i32
    return %c0_i32, %c0_i32_0 : i32, i32
  }
  func.func @transform_3(%arg0: i32) -> (i32, i32) {
    %c0_i32 = arith.constant 0 : i32
    %c0_i32_0 = arith.constant 0 : i32
    %c0_i32_1 = arith.constant 0 : i32
    return %c0_i32, %c0_i32_0 : i32, i32
  }
  func.func @transform_4(%arg0: i32) -> (i32, i32) {
    %c0_i32 = arith.constant 0 : i32
    %c0_i32_0 = arith.constant 0 : i32
    return %arg0, %c0_i32 : i32, i32
  }
}

</mosaic_0001>

<llo_original>
// kernel: tpu_custom_call.1
$region0: #{tpu_custom_call.1}
  #allocation0 [shape = 'u32[]', space=smem, size = 0x4, offset = 0x4, fixed_abs, tag = 'smem constant byte address 0x4 - core index']
  #allocation1 [shape = 'u32[144,128]{1,0:T(1,128)}', space=vmem, size = 0x12000, scoped, tag = 'internal scratch']
  %s0 = inlined_call_operand.vmem [shape: bf16[128,36], index: 0, kind: input, shape index: {}]
  %s1 = inlined_call_operand.vmem [shape: bf16[36,128], index: 1, kind: input, shape index: {}]
  %s2 = inlined_call_operand.vmem [shape: f32[1,128], index: 2, kind: input, shape index: {}]
  %s3 = inlined_call_operand.vmem [shape: f32[1,128], index: 3, kind: input, shape index: {}]
  %s4 = inlined_call_operand.hbm [shape: bf16[128,128], index: 4, kind: output, shape index: {}]
  %s5 = sld [smem:[#allocation0]]
  $region26: #{tpu_custom_call.1} parent=0
    _
  %s7 = ssub.s32 1, %s5
  %s8 = scalar_select 0, %s7, %s5
  $region1: #{tpu_custom_call.1} parent=0
    #allocation2 [shape = 'u8[32768]{0}', space=vmem, size = 0x8000, scoped, tag = 'output window, operand 0, single buffered']
    #allocation3 [shape = 's32[1]{0}', space=sflag, size = 0x4, scoped, tag = 'scoped memory for tpu_custom_call.1']
    %9 = vsyncpa [#allocation3], 0
    // Predicated region
    $region2: #{tpu_custom_call.1} parent=1 // pred_check
      _
    $region3: #{tpu_custom_call.1} parent=1 // pred_check_branch
      %11 = sbr.rel (0) target = $region5
    $region4: #{tpu_custom_call.1} parent=1 // pred_region
      _
    $region5: #{tpu_custom_call.1} parent=1 // pred_fallthru
      _
    // Predicated region
    $region6: #{tpu_custom_call.1} parent=1 // pred_check
      _
    $region7: #{tpu_custom_call.1} parent=1 // pred_check_branch
      %13 = sbr.rel (0) target = $region9
    $region8: #{tpu_custom_call.1} parent=1 // pred_region
      _
    $region9: #{tpu_custom_call.1} parent=1 // pred_fallthru
      _
    // Predicated region
    $region10: #{tpu_custom_call.1} parent=1 // pred_check
      _
    $region11: #{tpu_custom_call.1} parent=1 // pred_check_branch
      %15 = sbr.rel (0) target = $region13
    $region12: #{tpu_custom_call.1} parent=1 // pred_region
      _
    $region13: #{tpu_custom_call.1} parent=1 // pred_fallthru
      _
    // Predicated region
    $region14: #{tpu_custom_call.1} parent=1 // pred_check
      _
    $region15: #{tpu_custom_call.1} parent=1 // pred_check_branch
      %17 = sbr.rel (0) target = $region17
    $region16: #{tpu_custom_call.1} parent=1 // pred_region
      _
    $region17: #{tpu_custom_call.1} parent=1 // pred_fallthru
      _
    %v19 = vld [vmem:[%s0] sm:$0xf]
    %v20 = vld [vmem:[%s0 + $0x4] sm:$0xf]
    %v21 = vld [vmem:[%s0 + $0x8] sm:$0xf]
    %v22 = vld [vmem:[%s0 + $0xc] sm:$0xf]
    %v23 = vld [vmem:[%s0 + $0x10] sm:$0xf]
    %v24 = vld [vmem:[%s0 + $0x14] sm:$0xf]
    %v25 = vld [vmem:[%s0 + $0x18] sm:$0xf]
    %v26 = vld [vmem:[%s0 + $0x1c] sm:$0xf]
    %v27 = vld [vmem:[%s0 + $0x20] sm:$0xf]
    %v28 = vld [vmem:[%s0 + $0x24] sm:$0xf]
    %v29 = vld [vmem:[%s0 + $0x28] sm:$0xf]
    %v30 = vld [vmem:[%s0 + $0x2c] sm:$0xf]
    %v31 = vld [vmem:[%s0 + $0x30] sm:$0xf]
    %v32 = vld [vmem:[%s0 + $0x34] sm:$0xf]
    %v33 = vld [vmem:[%s0 + $0x38] sm:$0xf]
    %v34 = vld [vmem:[%s0 + $0x3c] sm:$0xf]
    %v35 = vld [vmem:[%s1] sm:$0xf]
    %v36 = vld [vmem:[%s1 + $0x4] sm:$0xf]
    %v37 = vld [vmem:[%s1 + $0x8] sm:$0xf]
    %v38 = vld [vmem:[%s1 + $0xc] sm:$0xf]
    %v39 = vld [vmem:[%s1 + $0x10] sm:$0x3]
    %v56 = vunpack.c.l.b16 %v19
    %v57 = vunpack.c.l.b16 %v20
    %v58 = vunpack.c.l.b16 %v21
    %v59 = vunpack.c.l.b16 %v22
    %v60 = vunpack.c.l.b16 %v23
    %v61 = vunpack.c.l.b16 %v24
    %v62 = vunpack.c.l.b16 %v25
    %v63 = vunpack.c.l.b16 %v26
    %v64 = vunpack.c.l.b16 %v27
    %v65 = vunpack.c.l.b16 %v28
    %v66 = vunpack.c.l.b16 %v29
    %v67 = vunpack.c.l.b16 %v30
    %v68 = vunpack.c.l.b16 %v31
    %v69 = vunpack.c.l.b16 %v32
    %v70 = vunpack.c.l.b16 %v33
    %v71 = vunpack.c.l.b16 %v34
    %v72 = vpack.c.b16 %v57, %v56
    %v73 = vpack.c.b16 %v59, %v58
    %v74 = vpack.c.b16 %v61, %v60
    %v75 = vpack.c.b16 %v63, %v62
    %v76 = vpack.c.b16 %v65, %v64
    %v77 = vpack.c.b16 %v67, %v66
    %v78 = vpack.c.b16 %v69, %v68
    %v79 = vpack.c.b16 %v71, %v70
    %v85 = vunpack.c.l.b16 %v35
    %v86 = vunpack.c.l.b16 %v36
    %v87 = vunpack.c.l.b16 %v37
    %v88 = vunpack.c.l.b16 %v38
    %v89 = vunpack.c.l.b16 %v39
    %v90 = vpack.c.b16 %v86, %v85
    %v91 = vpack.c.b16 %v88, %v87
    %v92 = vpack.c.b16 %v89, %v89
    %vm95 = vcmask 293888
    %v97 = vsel %vm95, %v72, 0
    %v100 = vsel %vm95, %v73, 0
    %v103 = vsel %vm95, %v74, 0
    %v106 = vsel %vm95, %v75, 0
    %v109 = vsel %vm95, %v76, 0
    %v112 = vsel %vm95, %v77, 0
    %v115 = vsel %vm95, %v78, 0
    %v118 = vsel %vm95, %v79, 0
    %vm120 = vcmask 1041408
    %v122 = vsel %vm120, %v92, 0
    %124 = vmatprep.subr.bf16.mxu0 0
    %125 = vmatpush1.bf16.msra.mxu0 %v90
    %126 = vmatprep.subr.bf16.mxu0 0
    %127 = vmatpush1.bf16.msra.mxu0 %v91
    %128 = vmatprep.subr.bf16.mxu0 0
    %129 = vmatpush1.bf16.msra.mxu0 %v122
    %130 = vmatprep.subr.bf16.mxu0 0
    %131 = vmatpush1.bf16.msra.mxu0 0
    %132 = vmatprep.subr.bf16.mxu0 0
    %133 = vmatpush1.bf16.msra.mxu0 0
    %134 = vmatprep.subr.bf16.mxu0 0
    %135 = vmatpush1.bf16.msra.mxu0 0
    %136 = vmatprep.subr.bf16.mxu0 0
    %137 = vmatpush1.bf16.msra.mxu0 0
    %138 = vmatprep.subr.bf16.mxu0 0
    %139 = vmatpush1.bf16.msra.mxu0 0
    %140 = vmatprep.subr.bf16.mxu0 0
    %141 = vmatpush1.bf16.msra.mxu0 0
    %142 = vmatprep.subr.bf16.mxu0 0
    %143 = vmatpush1.bf16.msra.mxu0 0
    %144 = vmatprep.subr.bf16.mxu0 0
    %145 = vmatpush1.bf16.msra.mxu0 0
    %146 = vmatprep.subr.bf16.mxu0 0
    %147 = vmatpush1.bf16.msra.mxu0 0
    %148 = vmatprep.subr.bf16.mxu0 0
    %149 = vmatpush1.bf16.msra.mxu0 0
    %150 = vmatprep.subr.bf16.mxu0 0
    %151 = vmatpush1.bf16.msra.mxu0 0
    %152 = vmatprep.subr.bf16.mxu0 0
    %153 = vmatpush1.bf16.msra.mxu0 0
    %154 = vmatprep.subr.bf16.mxu0 0
    %155 = vmatpush1.bf16.msra.mxu0 0
    %156 = vmatprep.mubr.bf16.mxu0 0
    %157 = vmatmul.mubr.bf16.gmra.mrb[0].mxu0 %v97
    %v158 = vpop.f32.mrb[0].mxu0
    %v159 = vadd.f32 0.0, %v158
    %v160 = vpop.f32.mrb[0].mxu0
    %v161 = vpop.f32.mrb[0].mxu0
    %v162 = vadd.f32 0.0, %v161
    %v163 = vpop.f32.mrb[0].mxu0
    %164 = vmatprep.mubr.bf16.mxu0 0
    %165 = vmatmul.mubr.bf16.gmra.mrb[0].mxu0 %v100
    %v166 = vpop.f32.mrb[0].mxu0
    %v167 = vadd.f32 0.0, %v166
    %v168 = vpop.f32.mrb[0].mxu0
    %v169 = vpop.f32.mrb[0].mxu0
    %v170 = vadd.f32 0.0, %v169
    %v171 = vpop.f32.mrb[0].mxu0
    %172 = vmatprep.mubr.bf16.mxu0 0
    %173 = vmatmul.mubr.bf16.gmra.mrb[0].mxu0 %v103
    %v174 = vpop.f32.mrb[0].mxu0
    %v175 = vadd.f32 0.0, %v174
    %v176 = vpop.f32.mrb[0].mxu0
    %v177 = vpop.f32.mrb[0].mxu0
    %v178 = vadd.f32 0.0, %v177
    %v179 = vpop.f32.mrb[0].mxu0
    %180 = vmatprep.mubr.bf16.mxu0 0
    %181 = vmatmul.mubr.bf16.gmra.mrb[0].mxu0 %v106
    %v182 = vpop.f32.mrb[0].mxu0
    %v183 = vadd.f32 0.0, %v182
    %v184 = vpop.f32.mrb[0].mxu0
    %v185 = vpop.f32.mrb[0].mxu0
    %v186 = vadd.f32 0.0, %v185
    %v187 = vpop.f32.mrb[0].mxu0
    %188 = vmatprep.mubr.bf16.mxu0 0
    %189 = vmatmul.mubr.bf16.gmra.mrb[0].mxu0 %v109
    %v190 = vpop.f32.mrb[0].mxu0
    %v191 = vadd.f32 0.0, %v190
    %v192 = vpop.f32.mrb[0].mxu0
    %v193 = vpop.f32.mrb[0].mxu0
    %v194 = vadd.f32 0.0, %v193
    %v195 = vpop.f32.mrb[0].mxu0
    %196 = vmatprep.mubr.bf16.mxu0 0
    %197 = vmatmul.mubr.bf16.gmra.mrb[0].mxu0 %v112
    %v198 = vpop.f32.mrb[0].mxu0
    %v199 = vadd.f32 0.0, %v198
    %v200 = vpop.f32.mrb[0].mxu0
    %v201 = vpop.f32.mrb[0].mxu0
    %v202 = vadd.f32 0.0, %v201
    %v203 = vpop.f32.mrb[0].mxu0
    %204 = vmatprep.mubr.bf16.mxu0 0
    %205 = vmatmul.mubr.bf16.gmra.mrb[0].mxu0 %v115
    %v206 = vpop.f32.mrb[0].mxu0
    %v207 = vadd.f32 0.0, %v206
    %v208 = vpop.f32.mrb[0].mxu0
    %v209 = vpop.f32.mrb[0].mxu0
    %v210 = vadd.f32 0.0, %v209
    %v211 = vpop.f32.mrb[0].mxu0
    %212 = vmatprep.mubr.bf16.mxu0 0
    %213 = vmatmul.mubr.bf16.gmra.mrb[0].mxu0 %v118
    %v214 = vpop.f32.mrb[0].mxu0
    %v215 = vadd.f32 0.0, %v214
    %v216 = vpop.f32.mrb[0].mxu0
    %v217 = vpop.f32.mrb[0].mxu0
    %v218 = vadd.f32 0.0, %v217
    %v219 = vpop.f32.mrb[0].mxu0
    %220 = vdwg.mxu0
    %v221 = vld [vmem:[%s2] sm:$0x1]
    %v223 = vlaneseq
    %v224 = vshrl.u32 %v223, 7
    %v225 = vsub.s32 0, %v224
    %v226 = vrot.slane %v221, %v225
    %v228 = vmul.f32 %v159, %v226
    %v229 = vmul.f32 %v162, %v226
    %v230 = vmul.f32 %v167, %v226
    %v231 = vmul.f32 %v170, %v226
    %v232 = vmul.f32 %v175, %v226
    %v233 = vmul.f32 %v178, %v226
    %v234 = vmul.f32 %v183, %v226
    %v235 = vmul.f32 %v186, %v226
    %v236 = vmul.f32 %v191, %v226
    %v237 = vmul.f32 %v194, %v226
    %v238 = vmul.f32 %v199, %v226
    %v239 = vmul.f32 %v202, %v226
    %v240 = vmul.f32 %v207, %v226
    %v241 = vmul.f32 %v210, %v226
    %v242 = vmul.f32 %v215, %v226
    %v243 = vmul.f32 %v218, %v226
    %v244 = vld [vmem:[%s3] sm:$0x1]
    %v246 = vlaneseq
    %v247 = vshrl.u32 %v246, 7
    %v248 = vsub.s32 0, %v247
    %v249 = vrot.slane %v244, %v248
    %v251 = vadd.f32 %v228, %v249
    %v252 = vadd.f32 %v229, %v249
    %v253 = vadd.f32 %v230, %v249
    %v254 = vadd.f32 %v231, %v249
    %v255 = vadd.f32 %v232, %v249
    %v256 = vadd.f32 %v233, %v249
    %v257 = vadd.f32 %v234, %v249
    %v258 = vadd.f32 %v235, %v249
    %v259 = vadd.f32 %v236, %v249
    %v260 = vadd.f32 %v237, %v249
    %v261 = vadd.f32 %v238, %v249
    %v262 = vadd.f32 %v239, %v249
    %v263 = vadd.f32 %v240, %v249
    %v264 = vadd.f32 %v241, %v249
    %v265 = vadd.f32 %v242, %v249
    %v266 = vadd.f32 %v243, %v249
    %v267 = vmax.f32 %v251, 0.0
    %v268 = vmax.f32 %v252, 0.0
    %v269 = vmax.f32 %v253, 0.0
    %v270 = vmax.f32 %v254, 0.0
    %v271 = vmax.f32 %v255, 0.0
    %v272 = vmax.f32 %v256, 0.0
    %v273 = vmax.f32 %v257, 0.0
    %v274 = vmax.f32 %v258, 0.0
    %v275 = vmax.f32 %v259, 0.0
    %v276 = vmax.f32 %v260, 0.0
    %v277 = vmax.f32 %v261, 0.0
    %v278 = vmax.f32 %v262, 0.0
    %v279 = vmax.f32 %v263, 0.0
    %v280 = vmax.f32 %v264, 0.0
    %v281 = vmax.f32 %v265, 0.0
    %v282 = vmax.f32 %v266, 0.0
    %v283 = vpack.c.bf16 %v268, %v267
    %v284 = vpack.c.bf16 %v270, %v269
    %v285 = vpack.c.bf16 %v272, %v271
    %v286 = vpack.c.bf16 %v274, %v273
    %v287 = vpack.c.bf16 %v276, %v275
    %v288 = vpack.c.bf16 %v278, %v277
    %v289 = vpack.c.bf16 %v280, %v279
    %v290 = vpack.c.bf16 %v282, %v281
    %v299 = vunpack.c.l.b16 %v283
    %v300 = vunpack.c.h.b16 %v283
    %v301 = vunpack.c.l.b16 %v284
    %v302 = vunpack.c.h.b16 %v284
    %v303 = vunpack.c.l.b16 %v285
    %v304 = vunpack.c.h.b16 %v285
    %v305 = vunpack.c.l.b16 %v286
    %v306 = vunpack.c.h.b16 %v286
    %v307 = vunpack.c.l.b16 %v287
    %v308 = vunpack.c.h.b16 %v287
    %v309 = vunpack.c.l.b16 %v288
    %v310 = vunpack.c.h.b16 %v288
    %v311 = vunpack.c.l.b16 %v289
    %v312 = vunpack.c.h.b16 %v289
    %v313 = vunpack.c.l.b16 %v290
    %v314 = vunpack.c.h.b16 %v290
    %v315 = vpack.c.b16 %v299, %v299
    %v316 = vpack.c.b16 %v300, %v300
    %v317 = vpack.c.b16 %v301, %v301
    %v318 = vpack.c.b16 %v302, %v302
    %v319 = vpack.c.b16 %v303, %v303
    %v320 = vpack.c.b16 %v304, %v304
    %v321 = vpack.c.b16 %v305, %v305
    %v322 = vpack.c.b16 %v306, %v306
    %v323 = vpack.c.b16 %v307, %v307
    %v324 = vpack.c.b16 %v308, %v308
    %v325 = vpack.c.b16 %v309, %v309
    %v326 = vpack.c.b16 %v310, %v310
    %v327 = vpack.c.b16 %v311, %v311
    %v328 = vpack.c.b16 %v312, %v312
    %v329 = vpack.c.b16 %v313, %v313
    %v330 = vpack.c.b16 %v314, %v314
    %347 = vst [vmem:[#allocation2] sm:$0xf] %v315
    %348 = vst [vmem:[#allocation2 + $0x4] sm:$0xf] %v316
    %349 = vst [vmem:[#allocation2 + $0x8] sm:$0xf] %v317
    %350 = vst [vmem:[#allocation2 + $0xc] sm:$0xf] %v318
    %351 = vst [vmem:[#allocation2 + $0x10] sm:$0xf] %v319
    %352 = vst [vmem:[#allocation2 + $0x14] sm:$0xf] %v320
    %353 = vst [vmem:[#allocation2 + $0x18] sm:$0xf] %v321
    %354 = vst [vmem:[#allocation2 + $0x1c] sm:$0xf] %v322
    %355 = vst [vmem:[#allocation2 + $0x20] sm:$0xf] %v323
    %356 = vst [vmem:[#allocation2 + $0x24] sm:$0xf] %v324
    %357 = vst [vmem:[#allocation2 + $0x28] sm:$0xf] %v325
    %358 = vst [vmem:[#allocation2 + $0x2c] sm:$0xf] %v326
    %359 = vst [vmem:[#allocation2 + $0x30] sm:$0xf] %v327
    %360 = vst [vmem:[#allocation2 + $0x34] sm:$0xf] %v328
    %361 = vst [vmem:[#allocation2 + $0x38] sm:$0xf] %v329
    %362 = vst [vmem:[#allocation2 + $0x3c] sm:$0xf] %v330
    // Predicated region
    $region18: #{tpu_custom_call.1} parent=1 // pred_check
      _
    $region19: #{tpu_custom_call.1} parent=1 // pred_check_branch
      %364 = sbr.rel (0) target = $region21
    $region20: #{tpu_custom_call.1} parent=1 // pred_region
      %s366 = ssub.s32 1024, 1024
      %367 = vsyncadd [#allocation3], %s366
      %s368 = sshll.u32 [#allocation2], 4
      %s369 = int_to_ptr.vmem [resolvable:$true] %s368
      %374 = dma.vmem_to_hbm [thread:$0]  %s369, 1024, %s4, [#allocation3], 64, 64, 4
    $region21: #{tpu_custom_call.1} parent=1 // pred_fallthru
      _
    // Predicated region
    $region22: #{tpu_custom_call.1} parent=1 // pred_check
      _
    $region23: #{tpu_custom_call.1} parent=1 // pred_check_branch
      %376 = sbr.rel (0) target = $region25
    $region24: #{tpu_custom_call.1} parent=1 // pred_region
      %377 = dma.done [#allocation3], 1024
    $region25: #{tpu_custom_call.1} parent=1 // pred_fallthru
      _
    %378 = vsyncpa [#allocation3], 1

</llo_original>
